<compile_context>
chip_gen: v6e
topology: v6e:2x2x1
jax: 0.10.0
libtpu: 0.0.40
codegen_flags: <defaults>
</compile_context>

<pallas_src>
import jax
import jax.numpy as jnp
from jax.experimental import pallas as pl
from jax.experimental.pallas import tpu as pltpu

LANE = 128      # TPU lane width: hidden dim padded to a multiple of this
SUBLANE = 8     # f32/bf16 sublane quantum: batch tiles in multiples of this


def _round_up(n, m):
    return (n + m - 1) // m * m


def dqn_kernel(x_ref, w1_ref, b1_ref, w2_ref, b2_ref, out_ref):
    # fc1: (tm, in) @ (in, h1_p) on the MXU, f32 accumulation.
    h = jnp.dot(x_ref[...], w1_ref[...], preferred_element_type=jnp.float32)
    # Bias add + ReLU in f32 on the VPU (v5e-safe; padded hidden cols stay 0).
    h = jnp.maximum(h + b1_ref[...], 0.0)
    # out: cast h back to the MXU operand dtype (bf16 on the fast path),
    # accumulate f32; bias add stays f32.
    y = jnp.dot(h.astype(w2_ref.dtype), w2_ref[...],
                preferred_element_type=jnp.float32)
    out_ref[...] = (y + b2_ref[...]).astype(out_ref.dtype)


def prepare_dqn_params(w1, b1, w2, b2, *, compute_dtype=jnp.bfloat16):
    """Pad the hidden dim to a lane multiple and cast MXU operands ONCE.

    Call at init / after each parameter update — NOT once per forward call.
    w1: [in_states, h1], b1: [1, h1] (or [h1]), w2: [h1, out], b2: [1, out].
    Biases stay f32 (elementwise math is f32 on all generations).
    Zero padding keeps the math exact: padded hidden cols give relu(0+0)=0 and
    padded w2 rows are 0, so they contribute nothing to the output.
    """
    in_states, h1 = w1.shape
    out_actions = w2.shape[1]
    h1_p = _round_up(h1, LANE)
    w1_p = jnp.zeros((in_states, h1_p), compute_dtype).at[:, :h1].set(
        w1.astype(compute_dtype))
    b1_p = jnp.zeros((1, h1_p), jnp.float32).at[:, :h1].set(
        jnp.reshape(b1, (1, -1)).astype(jnp.float32))
    w2_p = jnp.zeros((h1_p, out_actions), compute_dtype).at[:h1, :].set(
        w2.astype(compute_dtype))
    b2_p = jnp.reshape(b2, (1, -1)).astype(jnp.float32)
    return w1_p, b1_p, w2_p, b2_p


def _choose_tm(batch, block_b):
    """Batch tile size: multiple of 8, large, and yielding >=2 grid steps
    whenever possible so both v7x TensorCores get work."""
    if batch <= SUBLANE:
        return batch                      # single block equal to the full dim
    tm = min(block_b, pl.cdiv(batch, 2))  # >= 2 grid steps
    return _round_up(tm, SUBLANE)


def dqn_forward(x, w1_p, b1_p, w2_p, b2_p, *, block_b=2048):
    """Fused DQN forward.  x: [B, in_states]; params from prepare_dqn_params.
    Returns [B, out_actions] f32 Q-values."""
    B, in_states = x.shape
    h1_p = w1_p.shape[1]
    out_actions = w2_p.shape[1]

    # MXU operand dtype (bf16 on the fast path).  No-op if already matching.
    x = x.astype(w1_p.dtype)

    tm = _choose_tm(B, block_b)
    grid = (pl.cdiv(B, tm),)              # partial last block handled by Pallas

    out = pl.pallas_call(
        dqn_kernel,
        out_shape=jax.ShapeDtypeStruct((B, out_actions), jnp.float32),
        grid_spec=pltpu.PrefetchScalarGridSpec(
            num_scalar_prefetch=0,
            grid=grid,
            in_specs=[
                # x: tiled along batch (last dim equals the full array dim).
                pl.BlockSpec((tm, in_states), lambda i: (i, 0)),
                # weights / biases: full-array blocks, VMEM-resident across steps.
                pl.BlockSpec((in_states, h1_p), lambda i: (0, 0)),
                pl.BlockSpec((1, h1_p), lambda i: (0, 0)),
                pl.BlockSpec((h1_p, out_actions), lambda i: (0, 0)),
                pl.BlockSpec((1, out_actions), lambda i: (0, 0)),
            ],
            # Unpadded output: writes only the useful [tm, out_actions] bytes.
            out_specs=pl.BlockSpec((tm, out_actions), lambda i: (i, 0)),
        ),
        compiler_params=pltpu.CompilerParams(
            dimension_semantics=("parallel",),   # batch tiles across TCs (v7x)
            vmem_limit_bytes=32 * 1024 * 1024,   # guardrail; usage is ~0.2 MiB
        ),
    )(x, w1_p, b1_p, w2_p, b2_p)

    return out


def init_dqn_params(key, in_states, h1_nodes, out_actions):
    """Deterministic PyTorch-style (Kaiming-uniform-ish) init for the two Linears."""
    k1, k2, k3, k4 = jax.random.split(key, 4)
    bound1 = 1.0 / jnp.sqrt(in_states)
    bound2 = 1.0 / jnp.sqrt(h1_nodes)
    w1 = jax.random.uniform(k1, (in_states, h1_nodes), jnp.float32, -bound1, bound1)
    b1 = jax.random.uniform(k2, (1, h1_nodes), jnp.float32, -bound1, bound1)
    w2 = jax.random.uniform(k3, (h1_nodes, out_actions), jnp.float32, -bound2, bound2)
    b2 = jax.random.uniform(k4, (1, out_actions), jnp.float32, -bound2, bound2)
    return w1, b1, w2, b2


if __name__ == "__main__":
    # LunarLander-sized DQN: 8 observation dims, 32 hidden, 4 actions.
    B, in_states, h1_nodes, out_actions = 2, 8, 32, 4

    key = jax.random.PRNGKey(0)
    kx, kp = jax.random.split(key)
    x = jax.random.normal(kx, (B, in_states), dtype=jnp.float32)
    w1, b1, w2, b2 = init_dqn_params(kp, in_states, h1_nodes, out_actions)
    ref_fn = lambda xx: jnp.maximum(xx @ w1 + b1, 0.0) @ w2 + b2

    # --- exact f32 path at small shapes (single grid step) -----------------
    params_f32 = prepare_dqn_params(w1, b1, w2, b2, compute_dtype=jnp.float32)
    out = jax.block_until_ready(dqn_forward(x, *params_f32))
    assert out.shape == (B, out_actions)
    assert jnp.allclose(out, ref_fn(x), atol=1e-5, rtol=1e-5)

    # --- bf16 fast path: multi-step grid + masked partial last block -------
    params_bf16 = prepare_dqn_params(w1, b1, w2, b2, compute_dtype=jnp.bfloat16)
    B2 = 1000   # not a multiple of the tile size on purpose
    x_big = jax.random.normal(jax.random.PRNGKey(1), (B2, in_states), jnp.float32)
    out_big = jax.block_until_ready(dqn_forward(x_big, *params_bf16))
    assert out_big.shape == (B2, out_actions)
    assert jnp.allclose(out_big, ref_fn(x_big), atol=2e-2, rtol=2e-2)

    print("KERNEL_OK")
</pallas_src>

<mosaic_0001>
module attributes {stable_mosaic.version = 11 : i64} {
  func.func @dqn_kernel(%arg0: i32, %arg1: memref<2x8xf32, #tpu.memory_space<vmem>>, %arg2: memref<8x128xf32, #tpu.memory_space<vmem>>, %arg3: memref<1x128xf32, #tpu.memory_space<vmem>>, %arg4: memref<128x4xf32, #tpu.memory_space<vmem>>, %arg5: memref<1x4xf32, #tpu.memory_space<vmem>>, %arg6: memref<2x4xf32, #tpu.memory_space<vmem>>) attributes {dimension_semantics = [#tpu.dimension_semantics<parallel>], iteration_bounds = array<i64: 1>, scalar_prefetch = 0 : i64, scratch_operands = 0 : i64, tpu.core_type = #tpu.core_type<tc>, window_params = [{transform_indices = @transform_0, window_bounds = array<i64: 2, 8>}, {pipeline_mode = #tpu.pipeline_mode<synchronous>, transform_indices = @transform_1, window_bounds = array<i64: 8, 128>}, {pipeline_mode = #tpu.pipeline_mode<synchronous>, transform_indices = @transform_2, window_bounds = array<i64: 1, 128>}, {pipeline_mode = #tpu.pipeline_mode<synchronous>, transform_indices = @transform_3, window_bounds = array<i64: 128, 4>}, {pipeline_mode = #tpu.pipeline_mode<synchronous>, transform_indices = @transform_4, window_bounds = array<i64: 1, 4>}, {transform_indices = @transform_5, window_bounds = array<i64: 2, 4>}]} {
    %c0 = arith.constant 0 : index
    %c0_0 = arith.constant 0 : index
    %0 = vector.load %arg1[%c0, %c0_0] : memref<2x8xf32, #tpu.memory_space<vmem>>, vector<2x8xf32>
    %c0_1 = arith.constant 0 : index
    %c0_2 = arith.constant 0 : index
    %1 = vector.load %arg2[%c0_1, %c0_2] : memref<8x128xf32, #tpu.memory_space<vmem>>, vector<8x128xf32>
    %cst = arith.constant dense<0.000000e+00> : vector<2x128xf32>
    %2 = tpu.matmul %0, %1, %cst {dimension_numbers = #tpu.dot_dimension_numbers<[1], [0], [0], [1], [0, 0, 1, 1], [], []>} : vector<2x8xf32>, vector<8x128xf32>, vector<2x128xf32> -> vector<2x128xf32>
    %c0_3 = arith.constant 0 : index
    %c0_4 = arith.constant 0 : index
    %3 = vector.load %arg3[%c0_3, %c0_4] : memref<1x128xf32, #tpu.memory_space<vmem>>, vector<1x128xf32>
    %4 = vector.broadcast %3 : vector<1x128xf32> to vector<2x128xf32>
    %5 = arith.addf %2, %4 : vector<2x128xf32>
    %cst_5 = arith.constant 0.000000e+00 : f32
    %6 = vector.broadcast %cst_5 : f32 to vector<2x128xf32>
    %7 = arith.maximumf %5, %6 : vector<2x128xf32>
    %c0_6 = arith.constant 0 : index
    %c0_7 = arith.constant 0 : index
    %8 = vector.load %arg4[%c0_6, %c0_7] : memref<128x4xf32, #tpu.memory_space<vmem>>, vector<128x4xf32>
    %cst_8 = arith.constant dense<0.000000e+00> : vector<2x4xf32>
    %9 = tpu.matmul %7, %8, %cst_8 {dimension_numbers = #tpu.dot_dimension_numbers<[1], [0], [0], [1], [0, 0, 1, 1], [], []>} : vector<2x128xf32>, vector<128x4xf32>, vector<2x4xf32> -> vector<2x4xf32>
    %c0_9 = arith.constant 0 : index
    %c0_10 = arith.constant 0 : index
    %10 = vector.load %arg5[%c0_9, %c0_10] : memref<1x4xf32, #tpu.memory_space<vmem>>, vector<1x4xf32>
    %11 = vector.broadcast %10 : vector<1x4xf32> to vector<2x4xf32>
    %12 = arith.addf %9, %11 : vector<2x4xf32>
    %c0_11 = arith.constant 0 : index
    %c0_12 = arith.constant 0 : index
    %13 = vector.load %arg6[%c0_11, %c0_12] : memref<2x4xf32, #tpu.memory_space<vmem>>, vector<2x4xf32>
    tpu.vector_store %arg6[%c0_11, %c0_12], %12 {strides = array<i32>} : memref<2x4xf32, #tpu.memory_space<vmem>>, vector<2x4xf32>,
    return
  }
  func.func @transform_0(%arg0: i32) -> (i32, i32) {
    %c0_i32 = arith.constant 0 : i32
    %c0_i32_0 = arith.constant 0 : i32
    return %arg0, %c0_i32 : i32, i32
  }
  func.func @transform_1(%arg0: i32) -> (i32, i32) {
    %c0_i32 = arith.constant 0 : i32
    %c0_i32_0 = arith.constant 0 : i32
    %c0_i32_1 = arith.constant 0 : i32
    return %c0_i32, %c0_i32_0 : i32, i32
  }
  func.func @transform_2(%arg0: i32) -> (i32, i32) {
    %c0_i32 = arith.constant 0 : i32
    %c0_i32_0 = arith.constant 0 : i32
    %c0_i32_1 = arith.constant 0 : i32
    return %c0_i32, %c0_i32_0 : i32, i32
  }
  func.func @transform_3(%arg0: i32) -> (i32, i32) {
    %c0_i32 = arith.constant 0 : i32
    %c0_i32_0 = arith.constant 0 : i32
    %c0_i32_1 = arith.constant 0 : i32
    return %c0_i32, %c0_i32_0 : i32, i32
  }
  func.func @transform_4(%arg0: i32) -> (i32, i32) {
    %c0_i32 = arith.constant 0 : i32
    %c0_i32_0 = arith.constant 0 : i32
    %c0_i32_1 = arith.constant 0 : i32
    return %c0_i32, %c0_i32_0 : i32, i32
  }
  func.func @transform_5(%arg0: i32) -> (i32, i32) {
    %c0_i32 = arith.constant 0 : i32
    %c0_i32_0 = arith.constant 0 : i32
    return %arg0, %c0_i32 : i32, i32
  }
}

</mosaic_0001>

<llo_original>
// kernel: tpu_custom_call.1
$region0: #{tpu_custom_call.1}
  #allocation0 [shape = 'u32[]', space=smem, size = 0x4, offset = 0x4, fixed_abs, tag = 'smem constant byte address 0x4 - core index']
  #allocation1 [shape = 'u32[144,128]{1,0:T(1,128)}', space=vmem, size = 0x12000, scoped, tag = 'internal scratch']
  %s0 = inlined_call_operand.vmem [shape: f32[2,8], index: 0, kind: input, shape index: {}]
  %s1 = inlined_call_operand.vmem [shape: f32[8,128], index: 1, kind: input, shape index: {}]
  %s2 = inlined_call_operand.vmem [shape: f32[1,128], index: 2, kind: input, shape index: {}]
  %s3 = inlined_call_operand.vmem [shape: f32[128,4], index: 3, kind: input, shape index: {}]
  %s4 = inlined_call_operand.vmem [shape: f32[1,4], index: 4, kind: input, shape index: {}]
  %s5 = inlined_call_operand.hbm [shape: f32[2,4], index: 5, kind: output, shape index: {}]
  %s6 = sld [smem:[#allocation0]]
  $region30: #{tpu_custom_call.1} parent=0
    _
  %s8 = ssub.s32 1, %s6
  %s9 = scalar_select 0, %s8, %s6
  $region1: #{tpu_custom_call.1} parent=0
    #allocation2 [shape = 'u8[1024]{0}', space=vmem, size = 0x400, scoped, tag = 'output window, operand 0, single buffered']
    #allocation3 [shape = 's32[1]{0}', space=sflag, size = 0x4, scoped, tag = 'scoped memory for tpu_custom_call.1']
    %10 = vsyncpa [#allocation3], 0
    // Predicated region
    $region2: #{tpu_custom_call.1} parent=1 // pred_check
      _
    $region3: #{tpu_custom_call.1} parent=1 // pred_check_branch
      %12 = sbr.rel (0) target = $region5
    $region4: #{tpu_custom_call.1} parent=1 // pred_region
      _
    $region5: #{tpu_custom_call.1} parent=1 // pred_fallthru
      _
    // Predicated region
    $region6: #{tpu_custom_call.1} parent=1 // pred_check
      _
    $region7: #{tpu_custom_call.1} parent=1 // pred_check_branch
      %14 = sbr.rel (0) target = $region9
    $region8: #{tpu_custom_call.1} parent=1 // pred_region
      _
    $region9: #{tpu_custom_call.1} parent=1 // pred_fallthru
      _
    // Predicated region
    $region10: #{tpu_custom_call.1} parent=1 // pred_check
      _
    $region11: #{tpu_custom_call.1} parent=1 // pred_check_branch
      %16 = sbr.rel (0) target = $region13
    $region12: #{tpu_custom_call.1} parent=1 // pred_region
      _
    $region13: #{tpu_custom_call.1} parent=1 // pred_fallthru
      _
    // Predicated region
    $region14: #{tpu_custom_call.1} parent=1 // pred_check
      _
    $region15: #{tpu_custom_call.1} parent=1 // pred_check_branch
      %18 = sbr.rel (0) target = $region17
    $region16: #{tpu_custom_call.1} parent=1 // pred_region
      _
    $region17: #{tpu_custom_call.1} parent=1 // pred_fallthru
      _
    // Predicated region
    $region18: #{tpu_custom_call.1} parent=1 // pred_check
      _
    $region19: #{tpu_custom_call.1} parent=1 // pred_check_branch
      %20 = sbr.rel (0) target = $region21
    $region20: #{tpu_custom_call.1} parent=1 // pred_region
      _
    $region21: #{tpu_custom_call.1} parent=1 // pred_fallthru
      _
    %v21 = vld [vmem:[%s0] sm:$0x3]
    %v22 = vld [vmem:[%s1] sm:$0xff]
    %v23 = vld [vmem:[%s2] sm:$0x1]
    %v25 = vlaneseq
    %v26 = vshrl.u32 %v25, 7
    %v27 = vsub.s32 0, %v26
    %v28 = vrot.slane %v23, %v27
    %vm30 = vcmask 64512
    %v32 = vsel %vm30, %v21, 0
    %34 = vmatprep.subr.mxu0 0.0
    %35 = vmatpush1.msra.mxu0 0.0
    %36 = vmatprep.subr.mxu0 0.0
    %37 = vmatpush1.msra.mxu0 0.0
    %38 = vmatprep.subr.mxu0 0.0
    %39 = vmatpush1.msra.mxu0 0.0
    %40 = vmatprep.subr.mxu0 0.0
    %41 = vmatpush1.msra.mxu0 0.0
    %42 = vmatprep.subr.mxu0 0.0
    %43 = vmatpush1.msra.mxu0 0.0
    %44 = vmatprep.subr.mxu0 0.0
    %45 = vmatpush1.msra.mxu0 0.0
    %46 = vmatprep.subr.mxu0 0.0
    %47 = vmatpush1.msra.mxu0 0.0
    %48 = vmatprep.subr.mxu0 0.0
    %49 = vmatpush1.msra.mxu0 0.0
    %50 = vmatprep.subr.mxu0 0.0
    %51 = vmatpush1.msra.mxu0 0.0
    %52 = vmatprep.subr.mxu0 0.0
    %53 = vmatpush1.msra.mxu0 0.0
    %54 = vmatprep.subr.mxu0 0.0
    %55 = vmatpush1.msra.mxu0 0.0
    %56 = vmatprep.subr.mxu0 0.0
    %57 = vmatpush1.msra.mxu0 0.0
    %58 = vmatprep.subr.mxu0 0.0
    %59 = vmatpush1.msra.mxu0 0.0
    %60 = vmatprep.subr.mxu0 0.0
    %61 = vmatpush1.msra.mxu0 0.0
    %62 = vmatprep.subr.mxu0 0.0
    %63 = vmatpush1.msra.mxu0 0.0
    %64 = vmatprep.subr.mxu0 0.0
    %65 = vmatpush1.msra.mxu0 %v22
    %66 = vmatprep.subr.mxu0 0.0
    %67 = vmatpush2.msra.mxu0 0.0
    %68 = vmatprep.subr.mxu0 0.0
    %69 = vmatpush2.msra.mxu0 0.0
    %70 = vmatprep.subr.mxu0 0.0
    %71 = vmatpush2.msra.mxu0 0.0
    %72 = vmatprep.subr.mxu0 0.0
    %73 = vmatpush2.msra.mxu0 0.0
    %74 = vmatprep.subr.mxu0 0.0
    %75 = vmatpush2.msra.mxu0 0.0
    %76 = vmatprep.subr.mxu0 0.0
    %77 = vmatpush2.msra.mxu0 0.0
    %78 = vmatprep.subr.mxu0 0.0
    %79 = vmatpush2.msra.mxu0 0.0
    %80 = vmatprep.subr.mxu0 0.0
    %81 = vmatpush2.msra.mxu0 0.0
    %82 = vmatprep.subr.mxu0 0.0
    %83 = vmatpush2.msra.mxu0 0.0
    %84 = vmatprep.subr.mxu0 0.0
    %85 = vmatpush2.msra.mxu0 0.0
    %86 = vmatprep.subr.mxu0 0.0
    %87 = vmatpush2.msra.mxu0 0.0
    %88 = vmatprep.subr.mxu0 0.0
    %89 = vmatpush2.msra.mxu0 0.0
    %90 = vmatprep.subr.mxu0 0.0
    %91 = vmatpush2.msra.mxu0 0.0
    %92 = vmatprep.subr.mxu0 0.0
    %93 = vmatpush2.msra.mxu0 0.0
    %94 = vmatprep.subr.mxu0 0.0
    %95 = vmatpush2.msra.mxu0 0.0
    %96 = vmatprep.subr.mxu0 0.0
    %97 = vmatpush2.msra.mxu0 0.0
    %98 = vmatprep.mubr.f32.mxu0 0.0
    %99 = vmatmul.mubr.f32.gmra.mxu0 %v32
    %v100 = vpop.f32.mrf.mxu0
    %v101 = vadd.f32 %v28, %v100
    %v102 = vpop.f32.mrf.mxu0
    %103 = vdwg.mxu0
    %v104 = vmax.f32 %v101, 0.0
    %v105 = vld [vmem:[%s3] sm:$0xff]
    %v106 = vld [vmem:[%s3 + $0x8] sm:$0xff]
    %v107 = vld [vmem:[%s3 + $0x10] sm:$0xff]
    %v108 = vld [vmem:[%s3 + $0x18] sm:$0xff]
    %v109 = vld [vmem:[%s3 + $0x20] sm:$0xff]
    %v110 = vld [vmem:[%s3 + $0x28] sm:$0xff]
    %v111 = vld [vmem:[%s3 + $0x30] sm:$0xff]
    %v112 = vld [vmem:[%s3 + $0x38] sm:$0xff]
    %v113 = vld [vmem:[%s3 + $0x40] sm:$0xff]
    %v114 = vld [vmem:[%s3 + $0x48] sm:$0xff]
    %v115 = vld [vmem:[%s3 + $0x50] sm:$0xff]
    %v116 = vld [vmem:[%s3 + $0x58] sm:$0xff]
    %v117 = vld [vmem:[%s3 + $0x60] sm:$0xff]
    %v118 = vld [vmem:[%s3 + $0x68] sm:$0xff]
    %v119 = vld [vmem:[%s3 + $0x70] sm:$0xff]
    %v120 = vld [vmem:[%s3 + $0x78] sm:$0xff]
    %v121 = vld [vmem:[%s4] sm:$0x1]
    %v123 = vlaneseq
    %v124 = vshrl.u32 %v123, 7
    %v125 = vsub.s32 0, %v124
    %v126 = vrot.slane %v121, %v125
    %128 = vmatprep.subr.mxu0 0.0
    %129 = vmatpush1.msra.mxu0 %v120
    %130 = vmatprep.subr.mxu0 0.0
    %131 = vmatpush1.msra.mxu0 %v119
    %132 = vmatprep.subr.mxu0 0.0
    %133 = vmatpush1.msra.mxu0 %v118
    %134 = vmatprep.subr.mxu0 0.0
    %135 = vmatpush1.msra.mxu0 %v117
    %136 = vmatprep.subr.mxu0 0.0
    %137 = vmatpush1.msra.mxu0 %v116
    %138 = vmatprep.subr.mxu0 0.0
    %139 = vmatpush1.msra.mxu0 %v115
    %140 = vmatprep.subr.mxu0 0.0
    %141 = vmatpush1.msra.mxu0 %v114
    %142 = vmatprep.subr.mxu0 0.0
    %143 = vmatpush1.msra.mxu0 %v113
    %144 = vmatprep.subr.mxu0 0.0
    %145 = vmatpush1.msra.mxu0 %v112
    %146 = vmatprep.subr.mxu0 0.0
    %147 = vmatpush1.msra.mxu0 %v111
    %148 = vmatprep.subr.mxu0 0.0
    %149 = vmatpush1.msra.mxu0 %v110
    %150 = vmatprep.subr.mxu0 0.0
    %151 = vmatpush1.msra.mxu0 %v109
    %152 = vmatprep.subr.mxu0 0.0
    %153 = vmatpush1.msra.mxu0 %v108
    %154 = vmatprep.subr.mxu0 0.0
    %155 = vmatpush1.msra.mxu0 %v107
    %156 = vmatprep.subr.mxu0 0.0
    %157 = vmatpush1.msra.mxu0 %v106
    %158 = vmatprep.subr.mxu0 0.0
    %159 = vmatpush1.msra.mxu0 %v105
    %160 = vmatprep.subr.mxu0 0.0
    %161 = vmatpush2.msra.mxu0 0.0
    %162 = vmatprep.subr.mxu0 0.0
    %163 = vmatpush2.msra.mxu0 0.0
    %164 = vmatprep.subr.mxu0 0.0
    %165 = vmatpush2.msra.mxu0 0.0
    %166 = vmatprep.subr.mxu0 0.0
    %167 = vmatpush2.msra.mxu0 0.0
    %168 = vmatprep.subr.mxu0 0.0
    %169 = vmatpush2.msra.mxu0 0.0
    %170 = vmatprep.subr.mxu0 0.0
    %171 = vmatpush2.msra.mxu0 0.0
    %172 = vmatprep.subr.mxu0 0.0
    %173 = vmatpush2.msra.mxu0 0.0
    %174 = vmatprep.subr.mxu0 0.0
    %175 = vmatpush2.msra.mxu0 0.0
    %176 = vmatprep.subr.mxu0 0.0
    %177 = vmatpush2.msra.mxu0 0.0
    %178 = vmatprep.subr.mxu0 0.0
    %179 = vmatpush2.msra.mxu0 0.0
    %180 = vmatprep.subr.mxu0 0.0
    %181 = vmatpush2.msra.mxu0 0.0
    %182 = vmatprep.subr.mxu0 0.0
    %183 = vmatpush2.msra.mxu0 0.0
    %184 = vmatprep.subr.mxu0 0.0
    %185 = vmatpush2.msra.mxu0 0.0
    %186 = vmatprep.subr.mxu0 0.0
    %187 = vmatpush2.msra.mxu0 0.0
    %188 = vmatprep.subr.mxu0 0.0
    %189 = vmatpush2.msra.mxu0 0.0
    %190 = vmatprep.subr.mxu0 0.0
    %191 = vmatpush2.msra.mxu0 0.0
    %192 = vmatprep.mubr.f32.mxu0 0.0
    %193 = vmatmul.mubr.f32.gmra.mxu0 %v104
    %v194 = vpop.f32.mrf.mxu0
    %v195 = vadd.f32 %v126, %v194
    %v196 = vpop.f32.mrf.mxu0
    %197 = vdwg.mxu0
    %vm198 = vcmask 25600
    %199 = vst.msk [vmem:[#allocation2] sm:$0x3] %vm198, %v195
    // Predicated region
    $region22: #{tpu_custom_call.1} parent=1 // pred_check
      _
    $region23: #{tpu_custom_call.1} parent=1 // pred_check_branch
      %201 = sbr.rel (0) target = $region25
    $region24: #{tpu_custom_call.1} parent=1 // pred_region
      %s203 = ssub.s32 32, 32
      %204 = vsyncadd [#allocation3], %s203
      %s206 = sshll.u32 [#allocation2], 4
      %s207 = int_to_ptr.vmem [resolvable:$true] %s206
      %209 = dma.vmem_to_hbm [thread:$0]  %s207, 32, %s5, [#allocation3]
    $region25: #{tpu_custom_call.1} parent=1 // pred_fallthru
      _
    // Predicated region
    $region26: #{tpu_custom_call.1} parent=1 // pred_check
      _
    $region27: #{tpu_custom_call.1} parent=1 // pred_check_branch
      %211 = sbr.rel (0) target = $region29
    $region28: #{tpu_custom_call.1} parent=1 // pred_region
      %212 = dma.done [#allocation3], 32
    $region29: #{tpu_custom_call.1} parent=1 // pred_fallthru
      _
    %213 = vsyncpa [#allocation3], 1

</llo_original>
